<compile_context>
chip_gen: v5e
topology: v5e:2x2
jax: 0.10.0
libtpu: 0.0.40
codegen_flags: <defaults>
</compile_context>

<pallas_src>
import functools

import jax
import jax.numpy as jnp
from jax import lax
from jax.experimental import pallas as pl
from jax.experimental.pallas import tpu as pltpu

# ---- packed parameter buffer layout (rows multiple of 8, 128 lanes) ----------
_L1_OFF, _L1_OUT = 0, 16      # Linear(F, 16)
_L2_OFF, _L2_OUT = 16, 64     # Linear(16, 64)
_L3_OFF, _L3_OUT = 80, 64     # Linear(64, 64)
_L6_OFF, _L6_OUT = 144, 1     # Linear(64, 1)
_PACK_ROWS = 152              # 16 + 64 + 64 + 8 (last row block padded to 8)
_PACK_COLS = 128              # weights in cols [0, 120), biases in col 127
_BIAS_COL = 127
_MAX_IN = 120                 # max (padded) fan-in representable in the buffer

# "A @ B^T" contraction (contract dim 1 of both operands) — the q @ k^T pattern.
_NT_DIMS = (((1,), (1,)), ((), ()))


def mlp_kernel(p_ref, x_ref, o_ref, *, compute_dtype):
    """p_ref: (152, 128) f32 packed params (constant block -> VMEM-resident).
    x_ref: (TB, F_pad) natural-layout batch tile.  o_ref: (1, TB), lane-dense."""
    f32 = jnp.float32
    cdt = compute_dtype
    f_pad = x_ref.shape[1]

    x = x_ref[...].astype(cdt)                                        # (TB, Fp)

    w1 = p_ref[_L1_OFF:_L1_OFF + _L1_OUT, 0:f_pad].astype(cdt)        # (16, Fp)
    b1 = p_ref[_L1_OFF:_L1_OFF + _L1_OUT, _BIAS_COL:_BIAS_COL + 1]    # (16,1) f32
    w2 = p_ref[_L2_OFF:_L2_OFF + _L2_OUT, 0:16].astype(cdt)           # (64,16)
    b2 = p_ref[_L2_OFF:_L2_OFF + _L2_OUT, _BIAS_COL:_BIAS_COL + 1]
    w3 = p_ref[_L3_OFF:_L3_OFF + _L3_OUT, 0:64].astype(cdt)           # (64,64)
    b3 = p_ref[_L3_OFF:_L3_OFF + _L3_OUT, _BIAS_COL:_BIAS_COL + 1]
    w6 = p_ref[_L6_OFF:_L6_OFF + _L6_OUT, 0:64].astype(cdt)           # (1,64)
    b6 = p_ref[_L6_OFF:_L6_OFF + _L6_OUT, _BIAS_COL:_BIAS_COL + 1]

    # Layer 1 folds the layout change: (16,Fp) x (TB,Fp) contracted over Fp
    # -> feature-major (16, TB); batch stays on the 128-lane axis from here on.
    h = lax.dot_general(w1, x, _NT_DIMS, preferred_element_type=f32)
    h = jnp.maximum(h + b1, 0.0).astype(cdt)                          # (16, TB)
    # Layer 2: (64,16) @ (16,TB)
    h = jnp.dot(w2, h, preferred_element_type=f32)
    h = jnp.maximum(h + b2, 0.0).astype(cdt)                          # (64, TB)
    # Layer 3: (64,64) @ (64,TB)
    h = jnp.dot(w3, h, preferred_element_type=f32)
    h = jnp.maximum(h + b3, 0.0).astype(cdt)                          # (64, TB)
    # Output layer (linear6): (1,64) @ (64,TB) -> lane-dense (1, TB) store.
    # (Could move off the MXU as broadcast-mul + sublane reduce; skipped since
    #  profiling has not shown the MXU chain to be the per-tile binder.)
    o = jnp.dot(w6, h, preferred_element_type=f32) + b6
    o_ref[...] = o.astype(o_ref.dtype)


def _round_up(x, m):
    return ((x + m - 1) // m) * m


def _device_kind():
    try:
        return jax.devices()[0].device_kind.lower()
    except Exception:
        return ""


def _default_compute_dtype():
    kind = _device_kind()
    if "v6" in kind or "v7" in kind or "7x" in kind:
        return jnp.bfloat16          # MXU-native operands on v6e/v7x
    return jnp.float32               # v5e: no bf16 VPU, keep f32 end-to-end


def _dimension_semantics():
    kind = _device_kind()
    if "v7" in kind or "7x" in kind:
        core_parallel = getattr(pltpu, "CORE_PARALLEL", None)
        if core_parallel is not None:
            return (core_parallel,)  # shard batch tiles across the 2 TCs
    return ("parallel",)


def _vmem_limit_bytes():
    try:
        cap = int(pltpu.get_tpu_info().vmem_capacity_bytes)
    except Exception:
        return 32 * 1024 * 1024
    # Leave headroom below physical VMEM on every chip (v7x has only 64 MiB/TC).
    return max(32 * 1024 * 1024, min(cap * 3 // 4, 56 * 1024 * 1024))


def pack_params(pt_params):
    """Pack PyTorch-layout weights (out,in) and biases (out,) into one (152,128)
    f32 buffer.  Weight columns beyond the true fan-in stay zero so the kernel
    can read an 8-aligned [0:F_pad) lane window."""
    buf = jnp.zeros((_PACK_ROWS, _PACK_COLS), jnp.float32)
    layout = (("1", _L1_OFF, _L1_OUT), ("2", _L2_OFF, _L2_OUT),
              ("3", _L3_OFF, _L3_OUT), ("6", _L6_OFF, _L6_OUT))
    for name, off, out_dim in layout:
        w = jnp.asarray(pt_params["w" + name], jnp.float32)          # (out, in)
        b = jnp.asarray(pt_params["b" + name], jnp.float32).reshape(out_dim)
        if w.shape[1] > _MAX_IN:
            raise ValueError("fan-in too large for the packed parameter buffer")
        buf = buf.at[off:off + out_dim, 0:w.shape[1]].set(w)
        buf = buf.at[off:off + out_dim, _BIAS_COL].set(b)
    return buf


def model_forward(x, packed, *, compute_dtype=None, max_block_b=8192):
    """Forward pass of `Model`.  x: (B, F) -> (B, 1) f32.

    packed: (152, 128) f32 buffer from pack_params().
    compute_dtype: matmul-operand dtype (None -> bf16 on v6e/v7x, f32 on v5e);
    accumulation, biases and ReLU are always f32.
    max_block_b: batch-tile upper bound; sweep 4096-16384 for the target chip.
    """
    # TODO(synk): if this forward is the ODE RHS evaluated at many time points,
    # stack those evaluations into the batch dimension at the call site so one
    # pallas_call amortizes launch/DMA cost; producing x with F already a
    # multiple of 8 (or feature-major) upstream removes the pad op too.
    if compute_dtype is None:
        compute_dtype = _default_compute_dtype()
    if x.dtype != jnp.float32:
        x = x.astype(jnp.float32)            # matches `x.float()` in the module
    B, F = x.shape
    f_pad = _round_up(max(F, 1), 8)          # 8-aligned fan-in
    if f_pad > _MAX_IN:
        raise ValueError(f"features={F} exceeds packed-buffer capacity")
    if f_pad != F:
        x = jnp.pad(x, ((0, 0), (0, f_pad - F)))   # tiny; fuses with producers
    assert packed.shape == (_PACK_ROWS, _PACK_COLS)

    max_block_b = max(128, _round_up(max_block_b, 128))
    tb = min(max_block_b, _round_up(B, 128))        # lane-aligned batch tile
    grid = (pl.cdiv(B, tb),)

    kernel = functools.partial(mlp_kernel, compute_dtype=compute_dtype)
    out = pl.pallas_call(
        kernel,
        out_shape=jax.ShapeDtypeStruct((1, B), jnp.float32),
        grid=grid,
        in_specs=[
            # Params: constant block index -> fetched once, VMEM-resident.
            # (pipeline_mode=pl.Buffered(1) would save 76 KiB; skipped, noise.)
            pl.BlockSpec((_PACK_ROWS, _PACK_COLS), lambda i: (0, 0)),
            # Natural-layout batch tile; orientation handled inside the kernel.
            pl.BlockSpec((tb, f_pad), lambda i: (i, 0)),
        ],
        out_specs=pl.BlockSpec((1, tb), lambda i: (0, i)),
        compiler_params=pltpu.CompilerParams(
            dimension_semantics=_dimension_semantics(),
            vmem_limit_bytes=_vmem_limit_bytes(),
        ),
    )(packed, x)
    return out.reshape(B, 1)                 # (1,B) -> (B,1): free reshape


def init_params(key, features):
    """Deterministic init matching nn.Linear shapes used in forward (PyTorch layout)."""
    dims = [("1", features, 16), ("2", 16, 64), ("3", 64, 64), ("6", 64, 1)]
    params = {}
    for name, fan_in, fan_out in dims:
        key, kw, kb = jax.random.split(key, 3)
        bound = 1.0 / jnp.sqrt(jnp.float32(fan_in))
        params["w" + name] = jax.random.uniform(
            kw, (fan_out, fan_in), jnp.float32, -bound, bound)   # (out, in)
        params["b" + name] = jax.random.uniform(
            kb, (fan_out,), jnp.float32, -bound, bound)
    return params


def model_forward_ref(x, p):
    """Pure-JAX reference (PyTorch-layout params)."""
    x = x.astype(jnp.float32)
    h = jnp.maximum(x @ p["w1"].T + p["b1"], 0.0)
    h = jnp.maximum(h @ p["w2"].T + p["b2"], 0.0)
    h = jnp.maximum(h @ p["w3"].T + p["b3"], 0.0)
    return h @ p["w6"].T + p["b6"]


if __name__ == "__main__":
    key = jax.random.PRNGKey(0)
    key, kx1, kx2 = jax.random.split(key, 3)

    batch, features = 8, 4
    pt_params = init_params(key, features)
    packed = pack_params(pt_params)

    # --- small batch, single tile, f32 matmuls: tight check vs reference ---
    x = jax.random.normal(kx1, (batch, features), jnp.float32)
    out = jax.block_until_ready(model_forward(x, packed, compute_dtype=jnp.float32))
    ref = model_forward_ref(x, pt_params)
    assert out.shape == (batch, 1), out.shape
    assert jnp.allclose(out, ref, atol=1e-5, rtol=1e-5), "f32 mismatch vs reference"

    # --- multi-tile grid (partial last tile) exercising the batch pipeline ---
    x2 = jax.random.normal(kx2, (300, features), jnp.float32)
    out2 = jax.block_until_ready(
        model_forward(x2, packed, compute_dtype=jnp.float32, max_block_b=128))
    ref2 = model_forward_ref(x2, pt_params)
    assert out2.shape == (300, 1), out2.shape
    assert jnp.allclose(out2, ref2, atol=1e-5, rtol=1e-5), "tiled f32 mismatch"

    # --- chip-default compute dtype (bf16 on v6e/v7x, f32 on v5e) ---
    out3 = jax.block_until_ready(model_forward(x2, packed))
    assert out3.shape == (300, 1), out3.shape
    assert jnp.allclose(out3, ref2, atol=5e-2, rtol=5e-2), "default-dtype mismatch"

    # --- explicit bf16 MXU-operand path (f32 accumulate / f32 biases & ReLU) ---
    out_bf16 = jax.block_until_ready(
        model_forward(x2, packed, compute_dtype=jnp.bfloat16, max_block_b=128))
    assert jnp.allclose(out_bf16, ref2, atol=5e-2, rtol=5e-2), "bf16 mismatch"

    print("KERNEL_OK")
</pallas_src>

<mosaic_0001>
module attributes {stable_mosaic.version = 11 : i64} {
  func.func @mlp_kernel(%arg0: i32, %arg1: memref<152x128xf32, #tpu.memory_space<vmem>>, %arg2: memref<128x8xf32, #tpu.memory_space<vmem>>, %arg3: memref<1x128xf32, #tpu.memory_space<vmem>>) attributes {dimension_semantics = [#tpu.dimension_semantics<parallel>], iteration_bounds = array<i64: 1>, scalar_prefetch = 0 : i64, scratch_operands = 0 : i64, tpu.core_type = #tpu.core_type<tc>, window_params = [{pipeline_mode = #tpu.pipeline_mode<synchronous>, transform_indices = @transform_0, window_bounds = array<i64: 152, 128>}, {transform_indices = @transform_1, window_bounds = array<i64: 128, 8>}, {transform_indices = @transform_2, window_bounds = array<i64: 1, 128>}]} {
    %c0 = arith.constant 0 : index
    %c0_0 = arith.constant 0 : index
    %0 = vector.load %arg2[%c0, %c0_0] : memref<128x8xf32, #tpu.memory_space<vmem>>, vector<128x8xf32>
    %c0_1 = arith.constant 0 : index
    %c0_2 = arith.constant 0 : index
    %1 = vector.load %arg1[%c0_1, %c0_2] : memref<152x128xf32, #tpu.memory_space<vmem>>, vector<16x8xf32>
    %c0_3 = arith.constant 0 : index
    %c127 = arith.constant 127 : index
    %2 = vector.load %arg1[%c0_3, %c127] : memref<152x128xf32, #tpu.memory_space<vmem>>, vector<16x1xf32>
    %c16 = arith.constant 16 : index
    %c0_4 = arith.constant 0 : index
    %3 = vector.load %arg1[%c16, %c0_4] : memref<152x128xf32, #tpu.memory_space<vmem>>, vector<64x16xf32>
    %c16_5 = arith.constant 16 : index
    %c127_6 = arith.constant 127 : index
    %4 = vector.load %arg1[%c16_5, %c127_6] : memref<152x128xf32, #tpu.memory_space<vmem>>, vector<64x1xf32>
    %c80 = arith.constant 80 : index
    %c0_7 = arith.constant 0 : index
    %5 = vector.load %arg1[%c80, %c0_7] : memref<152x128xf32, #tpu.memory_space<vmem>>, vector<64x64xf32>
    %c80_8 = arith.constant 80 : index
    %c127_9 = arith.constant 127 : index
    %6 = vector.load %arg1[%c80_8, %c127_9] : memref<152x128xf32, #tpu.memory_space<vmem>>, vector<64x1xf32>
    %c144 = arith.constant 144 : index
    %c0_10 = arith.constant 0 : index
    %7 = vector.load %arg1[%c144, %c0_10] : memref<152x128xf32, #tpu.memory_space<vmem>>, vector<1x64xf32>
    %c144_11 = arith.constant 144 : index
    %c127_12 = arith.constant 127 : index
    %8 = vector.load %arg1[%c144_11, %c127_12] : memref<152x128xf32, #tpu.memory_space<vmem>>, vector<1x1xf32>
    %cst = arith.constant dense<0.000000e+00> : vector<16x128xf32>
    %9 = tpu.matmul %1, %0, %cst {dimension_numbers = #tpu.dot_dimension_numbers<[1], [1], [0], [0], [0, 0, 1, 0], [], []>} : vector<16x8xf32>, vector<128x8xf32>, vector<16x128xf32> -> vector<16x128xf32>
    %10 = vector.broadcast %2 : vector<16x1xf32> to vector<16x128xf32>
    %11 = arith.addf %9, %10 : vector<16x128xf32>
    %cst_13 = arith.constant 0.000000e+00 : f32
    %12 = vector.broadcast %cst_13 : f32 to vector<16x128xf32>
    %13 = arith.maximumf %11, %12 : vector<16x128xf32>
    %cst_14 = arith.constant dense<0.000000e+00> : vector<64x128xf32>
    %14 = tpu.matmul %3, %13, %cst_14 {dimension_numbers = #tpu.dot_dimension_numbers<[1], [0], [0], [1], [0, 0, 1, 1], [], []>} : vector<64x16xf32>, vector<16x128xf32>, vector<64x128xf32> -> vector<64x128xf32>
    %15 = vector.broadcast %4 : vector<64x1xf32> to vector<64x128xf32>
    %16 = arith.addf %14, %15 : vector<64x128xf32>
    %cst_15 = arith.constant 0.000000e+00 : f32
    %17 = vector.broadcast %cst_15 : f32 to vector<64x128xf32>
    %18 = arith.maximumf %16, %17 : vector<64x128xf32>
    %cst_16 = arith.constant dense<0.000000e+00> : vector<64x128xf32>
    %19 = tpu.matmul %5, %18, %cst_16 {dimension_numbers = #tpu.dot_dimension_numbers<[1], [0], [0], [1], [0, 0, 1, 1], [], []>} : vector<64x64xf32>, vector<64x128xf32>, vector<64x128xf32> -> vector<64x128xf32>
    %20 = vector.broadcast %6 : vector<64x1xf32> to vector<64x128xf32>
    %21 = arith.addf %19, %20 : vector<64x128xf32>
    %cst_17 = arith.constant 0.000000e+00 : f32
    %22 = vector.broadcast %cst_17 : f32 to vector<64x128xf32>
    %23 = arith.maximumf %21, %22 : vector<64x128xf32>
    %cst_18 = arith.constant dense<0.000000e+00> : vector<1x128xf32>
    %24 = tpu.matmul %7, %23, %cst_18 {dimension_numbers = #tpu.dot_dimension_numbers<[1], [0], [0], [1], [0, 0, 1, 1], [], []>} : vector<1x64xf32>, vector<64x128xf32>, vector<1x128xf32> -> vector<1x128xf32>
    %25 = vector.broadcast %8 : vector<1x1xf32> to vector<1x128xf32>
    %26 = arith.addf %24, %25 : vector<1x128xf32>
    %c0_19 = arith.constant 0 : index
    %c0_20 = arith.constant 0 : index
    %27 = vector.load %arg3[%c0_19, %c0_20] : memref<1x128xf32, #tpu.memory_space<vmem>>, vector<1x128xf32>
    tpu.vector_store %arg3[%c0_19, %c0_20], %26 {strides = array<i32>} : memref<1x128xf32, #tpu.memory_space<vmem>>, vector<1x128xf32>,
    return
  }
  func.func @transform_0(%arg0: i32) -> (i32, i32) {
    %c0_i32 = arith.constant 0 : i32
    %c0_i32_0 = arith.constant 0 : i32
    %c0_i32_1 = arith.constant 0 : i32
    return %c0_i32, %c0_i32_0 : i32, i32
  }
  func.func @transform_1(%arg0: i32) -> (i32, i32) {
    %c0_i32 = arith.constant 0 : i32
    %c0_i32_0 = arith.constant 0 : i32
    return %arg0, %c0_i32 : i32, i32
  }
  func.func @transform_2(%arg0: i32) -> (i32, i32) {
    %c0_i32 = arith.constant 0 : i32
    %c0_i32_0 = arith.constant 0 : i32
    return %c0_i32, %arg0 : i32, i32
  }
}

</mosaic_0001>

<llo_original>
// kernel: tpu_custom_call.1
$region0: #{tpu_custom_call.1}
  #allocation0 [shape = 'u32[]', space=smem, size = 0x4, offset = 0x4, fixed_abs, tag = 'smem constant byte address 0x4 - core index']
  #allocation1 [shape = 'u32[72,128]{1,0:T(1,128)}', space=vmem, size = 0x9000, scoped, tag = 'internal scratch']
  %s0 = inlined_call_operand.hbm [shape: f32[152,128], index: 0, kind: input, shape index: {}]
  %s1 = inlined_call_operand.hbm [shape: f32[8,8], index: 1, kind: input, shape index: {}]
  %s2 = inlined_call_operand.hbm [shape: f32[1,8], index: 2, kind: output, shape index: {}]
  %s3 = sld [smem:[#allocation0]]
  $region26: #{tpu_custom_call.1} parent=0
    _
  %s5 = ssub.s32 1, %s3
  %s6 = scalar_select 0, %s5, %s3
  $region1: #{tpu_custom_call.1} parent=0
    #allocation2 [shape = 'u8[77824]{0}', space=vmem, size = 0x13000, scoped, tag = 'input window, operand 0, single buffered']
    #allocation3 [shape = 's32[1]{0}', space=sflag, size = 0x4, scoped, tag = 'scoped memory for tpu_custom_call.1']
    #allocation4 [shape = 's32[1]{0}', space=sflag, size = 0x4, scoped, tag = 'scoped memory for tpu_custom_call.1']
    #allocation5 [shape = 'u8[65536]{0}', space=vmem, size = 0x10000, scoped, tag = 'input window, operand 1, single buffered']
    #allocation6 [shape = 's32[1]{0}', space=sflag, size = 0x4, scoped, tag = 'scoped memory for tpu_custom_call.1']
    #allocation7 [shape = 'u8[512]{0}', space=vmem, size = 0x400, scoped, tag = 'output window, operand 0, single buffered']
    %7 = vsyncpa [#allocation3], 0
    %8 = vsyncpa [#allocation6], 0
    %9 = vsyncpa [#allocation4], 0
    // Predicated region
    $region2: #{tpu_custom_call.1} parent=1 // pred_check
      _
    $region3: #{tpu_custom_call.1} parent=1 // pred_check_branch
      %11 = sbr.rel (0) target = $region5
    $region4: #{tpu_custom_call.1} parent=1 // pred_region
      %13 = vsyncadd [#allocation3], 0
      %s14 = sshll.u32 %s0, 4
      %s15 = int_to_ptr.hbm [resolvable:$true] %s14
      %s16 = sshll.u32 [#allocation2], 4
      %s17 = int_to_ptr.vmem [resolvable:$true] %s16
      %22 = dma.hbm_to_vmem [thread:$0]  %s15, 2432, %s17, [#allocation3], 128, 128, 8
    $region5: #{tpu_custom_call.1} parent=1 // pred_fallthru
      _
    // Predicated region
    $region6: #{tpu_custom_call.1} parent=1 // pred_check
      _
    $region7: #{tpu_custom_call.1} parent=1 // pred_check_branch
      %24 = sbr.rel (0) target = $region9
    $region8: #{tpu_custom_call.1} parent=1 // pred_region
      %26 = vsyncadd [#allocation6], 1920
      %s27 = sshll.u32 %s1, 4
      %s28 = int_to_ptr.hbm [resolvable:$true] %s27
      %s29 = sshll.u32 [#allocation5], 4
      %s30 = int_to_ptr.vmem [resolvable:$true] %s29
      %35 = dma.hbm_to_vmem [thread:$0]  %s28, 128, %s30, [#allocation6], 128, 128, 8
    $region9: #{tpu_custom_call.1} parent=1 // pred_fallthru
      _
    // Predicated region
    $region10: #{tpu_custom_call.1} parent=1 // pred_check
      _
    $region11: #{tpu_custom_call.1} parent=1 // pred_check_branch
      %37 = sbr.rel (0) target = $region13
    $region12: #{tpu_custom_call.1} parent=1 // pred_region
      %39 = dma.done [#allocation3], 2432
    $region13: #{tpu_custom_call.1} parent=1 // pred_fallthru
      _
    // Predicated region
    $region14: #{tpu_custom_call.1} parent=1 // pred_check
      _
    $region15: #{tpu_custom_call.1} parent=1 // pred_check_branch
      %41 = sbr.rel (0) target = $region17
    $region16: #{tpu_custom_call.1} parent=1 // pred_region
      %43 = dma.done [#allocation6], 2048
    $region17: #{tpu_custom_call.1} parent=1 // pred_fallthru
      _
    %v44 = vld [vmem:[#allocation5] sm:$0xff]
    %v45 = vld [vmem:[#allocation5 + $0x8] sm:$0xff]
    %v46 = vld [vmem:[#allocation5 + $0x10] sm:$0xff]
    %v47 = vld [vmem:[#allocation5 + $0x18] sm:$0xff]
    %v48 = vld [vmem:[#allocation5 + $0x20] sm:$0xff]
    %v49 = vld [vmem:[#allocation5 + $0x28] sm:$0xff]
    %v50 = vld [vmem:[#allocation5 + $0x30] sm:$0xff]
    %v51 = vld [vmem:[#allocation5 + $0x38] sm:$0xff]
    %v52 = vld [vmem:[#allocation5 + $0x40] sm:$0xff]
    %v53 = vld [vmem:[#allocation5 + $0x48] sm:$0xff]
    %v54 = vld [vmem:[#allocation5 + $0x50] sm:$0xff]
    %v55 = vld [vmem:[#allocation5 + $0x58] sm:$0xff]
    %v56 = vld [vmem:[#allocation5 + $0x60] sm:$0xff]
    %v57 = vld [vmem:[#allocation5 + $0x68] sm:$0xff]
    %v58 = vld [vmem:[#allocation5 + $0x70] sm:$0xff]
    %v59 = vld [vmem:[#allocation5 + $0x78] sm:$0xff]
    %v60 = vld [vmem:[#allocation2] sm:$0xff]
    %v61 = vld [vmem:[#allocation2 + $0x8] sm:$0xff]
    %v62 = vld [vmem:[#allocation2 + $0x10] sm:$0xff]
    %v63 = vld [vmem:[#allocation2 + $0x18] sm:$0xff]
    %v64 = vld [vmem:[#allocation2 + $0x20] sm:$0xff]
    %v65 = vld [vmem:[#allocation2 + $0x28] sm:$0xff]
    %v66 = vld [vmem:[#allocation2 + $0x30] sm:$0xff]
    %v67 = vld [vmem:[#allocation2 + $0x38] sm:$0xff]
    %v68 = vld [vmem:[#allocation2 + $0x40] sm:$0xff]
    %v69 = vld [vmem:[#allocation2 + $0x48] sm:$0xff]
    %v70 = vld [vmem:[#allocation2 + $0x50] sm:$0xff]
    %v71 = vld [vmem:[#allocation2 + $0x58] sm:$0xff]
    %v72 = vld [vmem:[#allocation2 + $0x60] sm:$0xff]
    %v73 = vld [vmem:[#allocation2 + $0x68] sm:$0xff]
    %v74 = vld [vmem:[#allocation2 + $0x70] sm:$0xff]
    %v75 = vld [vmem:[#allocation2 + $0x78] sm:$0xff]
    %v76 = vld [vmem:[#allocation2 + $0x80] sm:$0xff]
    %v77 = vld [vmem:[#allocation2 + $0x88] sm:$0xff]
    %v78 = vld [vmem:[#allocation2 + $0x90] sm:$0x1]
    %80 = vset.pattern.permute.xlu0 127
    %81 = vperm.xlu0 %80, %v60
    %v82 = vpop.permute.xlu0 %81
    %85 = vset.pattern.permute.xlu0 127
    %86 = vperm.xlu0 %85, %v61
    %v87 = vpop.permute.xlu0 %86
    %vm89 = vcmask 64512
    %v90 = vsel %vm89, %v60, 0
    %v92 = vsel %vm89, %v61, 0
    %v95 = vsel %vm89, %v44, 0
    %v98 = vsel %vm89, %v45, 0
    %v101 = vsel %vm89, %v46, 0
    %v104 = vsel %vm89, %v47, 0
    %v107 = vsel %vm89, %v48, 0
    %v110 = vsel %vm89, %v49, 0
    %v113 = vsel %vm89, %v50, 0
    %v116 = vsel %vm89, %v51, 0
    %v119 = vsel %vm89, %v52, 0
    %v122 = vsel %vm89, %v53, 0
    %v125 = vsel %vm89, %v54, 0
    %v128 = vsel %vm89, %v55, 0
    %v131 = vsel %vm89, %v56, 0
    %v134 = vsel %vm89, %v57, 0
    %v137 = vsel %vm89, %v58, 0
    %v140 = vsel %vm89, %v59, 0
    %142 = vmatpush.xpose.msra.mxu0 %v140
    %143 = vmatpush.xpose.msra.mxu0 %v137
    %144 = vmatpush.xpose.msra.mxu0 %v134
    %145 = vmatpush.xpose.msra.mxu0 %v131
    %146 = vmatpush.xpose.msra.mxu0 %v128
    %147 = vmatpush.xpose.msra.mxu0 %v125
    %148 = vmatpush.xpose.msra.mxu0 %v122
    %149 = vmatpush.xpose.msra.mxu0 %v119
    %150 = vmatpush.xpose.msra.mxu0 %v116
    %151 = vmatpush.xpose.msra.mxu0 %v113
    %152 = vmatpush.xpose.msra.mxu0 %v110
    %153 = vmatpush.xpose.msra.mxu0 %v107
    %154 = vmatpush.xpose.msra.mxu0 %v104
    %155 = vmatpush.xpose.msra.mxu0 %v101
    %156 = vmatpush.xpose.msra.mxu0 %v98
    %157 = vmatpush.xpose.msra.mxu0 %v95
    %158 = vmatmul.f32.gmra.mxu0 %v90
    %v159 = vpop.f32.mrf.mxu0
    %v160 = vadd.f32 %v82, %v159
    %161 = vmatmul.f32.gmra.mxu0 %v92
    %v162 = vpop.f32.mrf.mxu0
    %v163 = vadd.f32 %v87, %v162
    %164 = vdwg.mxu0
    %v165 = vmax.f32 %v160, 0.0
    %v166 = vmax.f32 %v163, 0.0
    %168 = vset.pattern.permute.xlu0 127
    %169 = vperm.xlu0 %168, %v62
    %v170 = vpop.permute.xlu0 %169
    %173 = vset.pattern.permute.xlu0 127
    %174 = vperm.xlu0 %173, %v63
    %v175 = vpop.permute.xlu0 %174
    %178 = vset.pattern.permute.xlu0 127
    %179 = vperm.xlu0 %178, %v64
    %v180 = vpop.permute.xlu0 %179
    %183 = vset.pattern.permute.xlu0 127
    %184 = vperm.xlu0 %183, %v65
    %v185 = vpop.permute.xlu0 %184
    %188 = vset.pattern.permute.xlu0 127
    %189 = vperm.xlu0 %188, %v66
    %v190 = vpop.permute.xlu0 %189
    %193 = vset.pattern.permute.xlu0 127
    %194 = vperm.xlu0 %193, %v67
    %v195 = vpop.permute.xlu0 %194
    %198 = vset.pattern.permute.xlu0 127
    %199 = vperm.xlu0 %198, %v68
    %v200 = vpop.permute.xlu0 %199
    %203 = vset.pattern.permute.xlu0 127
    %204 = vperm.xlu0 %203, %v69
    %v205 = vpop.permute.xlu0 %204
    %vm207 = vcmask 130048
    %v208 = vsel %vm207, %v62, 0
    %v210 = vsel %vm207, %v63, 0
    %v212 = vsel %vm207, %v64, 0
    %v214 = vsel %vm207, %v65, 0
    %v216 = vsel %vm207, %v66, 0
    %v218 = vsel %vm207, %v67, 0
    %v220 = vsel %vm207, %v68, 0
    %v222 = vsel %vm207, %v69, 0
    %224 = vmatpush.msra.mxu0 0.0
    %225 = vmatpush.msra.mxu0 0.0
    %226 = vmatpush.msra.mxu0 0.0
    %227 = vmatpush.msra.mxu0 0.0
    %228 = vmatpush.msra.mxu0 0.0
    %229 = vmatpush.msra.mxu0 0.0
    %230 = vmatpush.msra.mxu0 0.0
    %231 = vmatpush.msra.mxu0 0.0
    %232 = vmatpush.msra.mxu0 0.0
    %233 = vmatpush.msra.mxu0 0.0
    %234 = vmatpush.msra.mxu0 0.0
    %235 = vmatpush.msra.mxu0 0.0
    %236 = vmatpush.msra.mxu0 0.0
    %237 = vmatpush.msra.mxu0 0.0
    %238 = vmatpush.msra.mxu0 %v166
    %239 = vmatpush.msra.mxu0 %v165
    %240 = vmatmul.f32.gmra.mxu0 %v208
    %v241 = vpop.f32.mrf.mxu0
    %v242 = vadd.f32 %v170, %v241
    %243 = vmatmul.f32.gmra.mxu0 %v210
    %v244 = vpop.f32.mrf.mxu0
    %v245 = vadd.f32 %v175, %v244
    %246 = vmatmul.f32.gmra.mxu0 %v212
    %v247 = vpop.f32.mrf.mxu0
    %v248 = vadd.f32 %v180, %v247
    %249 = vmatmul.f32.gmra.mxu0 %v214
    %v250 = vpop.f32.mrf.mxu0
    %v251 = vadd.f32 %v185, %v250
    %252 = vmatmul.f32.gmra.mxu0 %v216
    %v253 = vpop.f32.mrf.mxu0
    %v254 = vadd.f32 %v190, %v253
    %255 = vmatmul.f32.gmra.mxu0 %v218
    %v256 = vpop.f32.mrf.mxu0
    %v257 = vadd.f32 %v195, %v256
    %258 = vmatmul.f32.gmra.mxu0 %v220
    %v259 = vpop.f32.mrf.mxu0
    %v260 = vadd.f32 %v200, %v259
    %261 = vmatmul.f32.gmra.mxu0 %v222
    %v262 = vpop.f32.mrf.mxu0
    %v263 = vadd.f32 %v205, %v262
    %264 = vdwg.mxu0
    %v265 = vmax.f32 %v242, 0.0
    %v266 = vmax.f32 %v245, 0.0
    %v267 = vmax.f32 %v248, 0.0
    %v268 = vmax.f32 %v251, 0.0
    %v269 = vmax.f32 %v254, 0.0
    %v270 = vmax.f32 %v257, 0.0
    %v271 = vmax.f32 %v260, 0.0
    %v272 = vmax.f32 %v263, 0.0
    %274 = vset.pattern.permute.xlu0 127
    %275 = vperm.xlu0 %274, %v70
    %v276 = vpop.permute.xlu0 %275
    %279 = vset.pattern.permute.xlu0 127
    %280 = vperm.xlu0 %279, %v71
    %v281 = vpop.permute.xlu0 %280
    %284 = vset.pattern.permute.xlu0 127
    %285 = vperm.xlu0 %284, %v72
    %v286 = vpop.permute.xlu0 %285
    %289 = vset.pattern.permute.xlu0 127
    %290 = vperm.xlu0 %289, %v73
    %v291 = vpop.permute.xlu0 %290
    %294 = vset.pattern.permute.xlu0 127
    %295 = vperm.xlu0 %294, %v74
    %v296 = vpop.permute.xlu0 %295
    %299 = vset.pattern.permute.xlu0 127
    %300 = vperm.xlu0 %299, %v75
    %v301 = vpop.permute.xlu0 %300
    %304 = vset.pattern.permute.xlu0 127
    %305 = vperm.xlu0 %304, %v76
    %v306 = vpop.permute.xlu0 %305
    %309 = vset.pattern.permute.xlu0 127
    %310 = vperm.xlu0 %309, %v77
    %v311 = vpop.permute.xlu0 %310
    %vm313 = vcmask 523264
    %v314 = vsel %vm313, %v70, 0
    %v316 = vsel %vm313, %v71, 0
    %v318 = vsel %vm313, %v72, 0
    %v320 = vsel %vm313, %v73, 0
    %v322 = vsel %vm313, %v74, 0
    %v324 = vsel %vm313, %v75, 0
    %v326 = vsel %vm313, %v76, 0
    %v328 = vsel %vm313, %v77, 0
    %330 = vmatpush.msra.mxu0 0.0
    %331 = vmatpush.msra.mxu0 0.0
    %332 = vmatpush.msra.mxu0 0.0
    %333 = vmatpush.msra.mxu0 0.0
    %334 = vmatpush.msra.mxu0 0.0
    %335 = vmatpush.msra.mxu0 0.0
    %336 = vmatpush.msra.mxu0 0.0
    %337 = vmatpush.msra.mxu0 0.0
    %338 = vmatpush.msra.mxu0 %v272
    %339 = vmatpush.msra.mxu0 %v271
    %340 = vmatpush.msra.mxu0 %v270
    %341 = vmatpush.msra.mxu0 %v269
    %342 = vmatpush.msra.mxu0 %v268
    %343 = vmatpush.msra.mxu0 %v267
    %344 = vmatpush.msra.mxu0 %v266
    %345 = vmatpush.msra.mxu0 %v265
    %346 = vmatmul.f32.gmra.mxu0 %v314
    %v347 = vpop.f32.mrf.mxu0
    %v348 = vadd.f32 %v276, %v347
    %349 = vmatmul.f32.gmra.mxu0 %v316
    %v350 = vpop.f32.mrf.mxu0
    %v351 = vadd.f32 %v281, %v350
    %352 = vmatmul.f32.gmra.mxu0 %v318
    %v353 = vpop.f32.mrf.mxu0
    %v354 = vadd.f32 %v286, %v353
    %355 = vmatmul.f32.gmra.mxu0 %v320
    %v356 = vpop.f32.mrf.mxu0
    %v357 = vadd.f32 %v291, %v356
    %358 = vmatmul.f32.gmra.mxu0 %v322
    %v359 = vpop.f32.mrf.mxu0
    %v360 = vadd.f32 %v296, %v359
    %361 = vmatmul.f32.gmra.mxu0 %v324
    %v362 = vpop.f32.mrf.mxu0
    %v363 = vadd.f32 %v301, %v362
    %364 = vmatmul.f32.gmra.mxu0 %v326
    %v365 = vpop.f32.mrf.mxu0
    %v366 = vadd.f32 %v306, %v365
    %367 = vmatmul.f32.gmra.mxu0 %v328
    %v368 = vpop.f32.mrf.mxu0
    %v369 = vadd.f32 %v311, %v368
    %370 = vdwg.mxu0
    %v371 = vmax.f32 %v348, 0.0
    %v372 = vmax.f32 %v351, 0.0
    %v373 = vmax.f32 %v354, 0.0
    %v374 = vmax.f32 %v357, 0.0
    %v375 = vmax.f32 %v360, 0.0
    %v376 = vmax.f32 %v363, 0.0
    %v377 = vmax.f32 %v366, 0.0
    %v378 = vmax.f32 %v369, 0.0
    %380 = vset.pattern.permute.xlu0 127
    %381 = vperm.xlu0 %380, %v78
    %v382 = vpop.permute.xlu0 %381
    %v384 = vsel %vm313, %v78, 0
    %386 = vmatpush.msra.mxu0 0.0
    %387 = vmatpush.msra.mxu0 0.0
    %388 = vmatpush.msra.mxu0 0.0
    %389 = vmatpush.msra.mxu0 0.0
    %390 = vmatpush.msra.mxu0 0.0
    %391 = vmatpush.msra.mxu0 0.0
    %392 = vmatpush.msra.mxu0 0.0
    %393 = vmatpush.msra.mxu0 0.0
    %394 = vmatpush.msra.mxu0 %v378
    %395 = vmatpush.msra.mxu0 %v377
    %396 = vmatpush.msra.mxu0 %v376
    %397 = vmatpush.msra.mxu0 %v375
    %398 = vmatpush.msra.mxu0 %v374
    %399 = vmatpush.msra.mxu0 %v373
    %400 = vmatpush.msra.mxu0 %v372
    %401 = vmatpush.msra.mxu0 %v371
    %402 = vmatmul.f32.gmra.mxu0 %v384
    %v403 = vpop.f32.mrf.mxu0
    %v404 = vadd.f32 %v382, %v403
    %405 = vdwg.mxu0
    %406 = vst [vmem:[#allocation7] sm:$0x1] %v404
    // Predicated region
    $region18: #{tpu_custom_call.1} parent=1 // pred_check
      _
    $region19: #{tpu_custom_call.1} parent=1 // pred_check_branch
      %408 = sbr.rel (0) target = $region21
    $region20: #{tpu_custom_call.1} parent=1 // pred_region
      %410 = vsyncadd [#allocation4], 0
      %s412 = sshll.u32 [#allocation7], 4
      %s413 = int_to_ptr.vmem [resolvable:$true] %s412
      %s414 = sshll.u32 %s2, 4
      %s415 = int_to_ptr.hbm [resolvable:$true] %s414
      %417 = dma.vmem_to_hbm [thread:$0]  %s413, 16, %s415, [#allocation4]
    $region21: #{tpu_custom_call.1} parent=1 // pred_fallthru
      _
    // Predicated region
    $region22: #{tpu_custom_call.1} parent=1 // pred_check
      _
    $region23: #{tpu_custom_call.1} parent=1 // pred_check_branch
      %419 = sbr.rel (0) target = $region25
    $region24: #{tpu_custom_call.1} parent=1 // pred_region
      %421 = dma.done [#allocation4], 16
    $region25: #{tpu_custom_call.1} parent=1 // pred_fallthru
      _
    %422 = vsyncpa [#allocation3], 1
    %423 = vsyncpa [#allocation6], 1
    %424 = vsyncpa [#allocation4], 1

</llo_original>
